<compile_context>
chip_gen: v5e
topology: v5e:2x2
jax: 0.10.0
libtpu: 0.0.40
codegen_flags: <defaults>
</compile_context>

<pallas_src>
import functools
from typing import NamedTuple, Optional

import jax
import jax.numpy as jnp
from jax.experimental import pallas as pl
from jax.experimental.pallas import tpu as pltpu


def _round_up(a, m):
    return (a + m - 1) // m * m


def _tpu_tile_defaults():
    """(tm_default, th_default, vmem_budget_bytes) per TPU generation."""
    kind = ""
    try:
        dev = jax.devices()[0]
        if dev.platform == "tpu":
            kind = dev.device_kind.lower()
    except Exception:
        pass
    if "v6" in kind:
        # v6e: 128 MiB VMEM, needs ~650 FLOPs/weight-byte -> big token tiles.
        return 1024, 512, 100 * 1024 * 1024
    if "v7" in kind:
        # v7x: 64 MiB VMEM per TC; both TCs stream the same weights, so keep
        # tm large enough for per-chip intensity but fit well inside 64 MiB.
        return 512, 512, 44 * 1024 * 1024
    if "v5" in kind and ("lite" in kind or "v5e" in kind):
        # v5e: already near its 197 TF/s roofline at tm=256.
        return 256, 512, 48 * 1024 * 1024
    return 512, 512, 48 * 1024 * 1024


def _vmem_footprint_bytes(tm, th, Dp, Doutp, cbytes, obytes):
    """Double-buffered per-step VMEM footprint + the f32 accumulator."""
    per_buf = (tm * Dp * cbytes            # x tile
               + Dp * (2 * th) * cbytes    # fused [w1 | w2] tile
               + (2 * th) * 4              # fused [b1 | b2] tile (f32)
               + th * Doutp * cbytes       # w3 tile
               + Doutp * 4                 # b3 (f32)
               + tm * Doutp * obytes)      # output tile
    return 2 * per_buf + tm * Doutp * 4    # + f32 accumulator scratch


class SwiGLUParams(NamedTuple):
    w12: jax.Array   # (Dp, nh * 2*th) compute dtype; hidden block j = [w1_j | w2_j]
    b12: jax.Array   # (1, nh * 2*th)  f32
    w3: jax.Array    # (Hp, Doutp)     compute dtype
    b3: jax.Array    # (1, Doutp)      f32
    d_in: int
    hidden: int
    d_out: int
    th: int


def prepare_swiglu_params(w12, b12, w3, b3, *, th: Optional[int] = None,
                          compute_dtype=jnp.bfloat16) -> SwiGLUParams:
    """Pad / cast / repack weights ONCE (hoist out of the per-step path).

    w12: (D, 2H) pre-transposed vs torch nn.Linear, b12: (2H,),
    w3:  (H, Dout),                                 b3: (Dout,).
    """
    D, two_h = w12.shape
    H = two_h // 2
    Dout = w3.shape[1]

    if th is None:
        _, th, _ = _tpu_tile_defaults()
    th = min(th, _round_up(H, 128))
    th = _round_up(th, 128)

    Dp = _round_up(D, 128)
    Hp = _round_up(H, th)
    Doutp = _round_up(Dout, 128)
    nh = Hp // th

    # Split into gate/value halves, then interleave per hidden tile so that
    # the fused weight block j is exactly [w1_j | w2_j] (never mismatched).
    w1 = jnp.pad(w12[:, :H], ((0, Dp - D), (0, Hp - H)))
    w2 = jnp.pad(w12[:, H:], ((0, Dp - D), (0, Hp - H)))
    w12_packed = jnp.concatenate(
        [w1.reshape(Dp, nh, th), w2.reshape(Dp, nh, th)], axis=-1
    ).reshape(Dp, nh * 2 * th).astype(compute_dtype)

    b1 = jnp.pad(b12[:H], (0, Hp - H)).astype(jnp.float32)
    b2 = jnp.pad(b12[H:], (0, Hp - H)).astype(jnp.float32)
    b12_packed = jnp.concatenate(
        [b1.reshape(nh, th), b2.reshape(nh, th)], axis=-1
    ).reshape(1, nh * 2 * th)

    w3p = jnp.pad(w3, ((0, Hp - H), (0, Doutp - Dout))).astype(compute_dtype)
    b3p = jnp.pad(b3, (0, Doutp - Dout)).reshape(1, Doutp).astype(jnp.float32)

    return SwiGLUParams(w12_packed, b12_packed, w3p, b3p, D, H, Dout, th)


def _swiglu_kernel(x_ref, w12_ref, b12_ref, w3_ref, b3_ref, o_ref, acc_ref, *,
                   th):
    """One (token-tile i, hidden-tile j) grid step.

    x_ref:   (tm, Dp)        bf16
    w12_ref: (Dp, 2*th)      bf16 fused [w1_j | w2_j]
    b12_ref: (1, 2*th)       f32  fused [b1_j | b2_j]
    w3_ref:  (th, Doutp)     bf16
    b3_ref:  (1, Doutp)      f32
    o_ref:   (tm, Doutp)     out dtype (resident across hidden axis)
    acc_ref: (tm, Doutp)     f32 accumulator scratch
    """
    j = pl.program_id(1)

    x = x_ref[...]
    # Fused gate|value projection: one MXU pass, f32 accumulation.
    x12 = jnp.dot(x, w12_ref[...],
                  preferred_element_type=jnp.float32) + b12_ref[...]
    x1 = x12[:, :th]          # lane-aligned static slice (th multiple of 128)
    x2 = x12[:, th:]
    # SiLU(x1) * x2 in f32 (VPU + EUP).
    h = (x1 * jax.nn.sigmoid(x1)) * x2
    partial = jnp.dot(h.astype(w3_ref.dtype), w3_ref[...],
                      preferred_element_type=jnp.float32)

    @pl.when(j == 0)
    def _init():
        acc_ref[...] = partial          # direct write; no zero-init pass

    @pl.when(j != 0)
    def _accum():
        acc_ref[...] += partial

    @pl.when(j == pl.num_programs(1) - 1)
    def _finalize():
        o_ref[...] = (acc_ref[...] + b3_ref[...]).astype(o_ref.dtype)


def swiglu_ffn_prepared(x, params: SwiGLUParams, *, tm: Optional[int] = None):
    """x: (B, N, D) with D == params.d_in.  Returns (B, N, d_out)."""
    B, N, D = x.shape
    assert D == params.d_in, "x feature dim does not match prepared params"
    M = B * N
    th = params.th
    Dp = params.w12.shape[0]
    nh = params.w12.shape[1] // (2 * th)
    Hp = nh * th
    Doutp = params.w3.shape[1]
    out_dtype = x.dtype
    cdt = params.w12.dtype
    cbytes = jnp.dtype(cdt).itemsize
    obytes = jnp.dtype(out_dtype).itemsize

    tm_default, _, vmem_budget = _tpu_tile_defaults()
    if tm is None:
        tm = tm_default
    tm = max(8, _round_up(min(tm, _round_up(M, 8)), 8))
    # Shrink tm until the double-buffered footprint fits the VMEM budget.
    fit_target = vmem_budget - 4 * 1024 * 1024
    while tm > 8 and _vmem_footprint_bytes(tm, th, Dp, Doutp,
                                           cbytes, obytes) > fit_target:
        tm = max(8, _round_up(tm // 2, 8))
    # Rebalance so the last token tile carries little zero padding
    # (M is padded to a multiple of 8, never up to a multiple of a huge tm).
    n_tt = -(-M // tm)
    tm = min(tm, _round_up(-(-M // n_tt), 8))
    Mp = n_tt * tm

    x2d = x.reshape(M, D)
    if Mp != M or Dp != D:
        x2d = jnp.pad(x2d, ((0, Mp - M), (0, Dp - D)))
    x2d = x2d.astype(cdt)

    grid = (n_tt, nh)

    flops = 2 * Mp * Dp * (2 * Hp) + 2 * Mp * Hp * Doutp
    # x read once per token tile; weights re-streamed once per token tile.
    bytes_accessed = (Mp * Dp * cbytes
                      + n_tt * (Dp * 2 * Hp * cbytes
                                + Hp * Doutp * cbytes
                                + 2 * Hp * 4 + Doutp * 4)
                      + Mp * Doutp * obytes)

    out2d = pl.pallas_call(
        functools.partial(_swiglu_kernel, th=th),
        out_shape=jax.ShapeDtypeStruct((Mp, Doutp), out_dtype),
        grid_spec=pltpu.PrefetchScalarGridSpec(
            num_scalar_prefetch=0,
            grid=grid,
            in_specs=[
                pl.BlockSpec((tm, Dp), lambda i, j: (i, 0)),        # x tile
                pl.BlockSpec((Dp, 2 * th), lambda i, j: (0, j)),    # [w1|w2]
                pl.BlockSpec((1, 2 * th), lambda i, j: (0, j)),     # [b1|b2]
                pl.BlockSpec((th, Doutp), lambda i, j: (j, 0)),     # w3 tile
                pl.BlockSpec((1, Doutp), lambda i, j: (0, 0)),      # b3
            ],
            out_specs=pl.BlockSpec((tm, Doutp), lambda i, j: (i, 0)),
            scratch_shapes=[pltpu.VMEM((tm, Doutp), jnp.float32)],
        ),
        compiler_params=pltpu.CompilerParams(
            dimension_semantics=("parallel", "arbitrary"),
            vmem_limit_bytes=int(vmem_budget),
        ),
        cost_estimate=pl.CostEstimate(
            flops=int(flops),
            transcendentals=int(Mp * Hp),
            bytes_accessed=int(bytes_accessed),
        ),
    )(x2d, params.w12, params.b12, params.w3, params.b3)

    return out2d[:M, :params.d_out].reshape(B, N, params.d_out)


def swiglu_ffn(x, w12, b12, w3, b3, *, tm=None, th=None,
               compute_dtype=jnp.bfloat16):
    """Convenience wrapper (prepares params per call).  For repeated use,
    call prepare_swiglu_params() once and swiglu_ffn_prepared() per step."""
    params = prepare_swiglu_params(w12, b12, w3, b3, th=th,
                                   compute_dtype=compute_dtype)
    return swiglu_ffn_prepared(x, params, tm=tm)


def swiglu_ffn_ref(x, w12, b12, w3, b3):
    """Pure-JAX f32 reference matching the PyTorch forward."""
    H = w12.shape[1] // 2
    x12 = jnp.einsum("bnd,dh->bnh", x, w12) + b12
    x1, x2 = x12[..., :H], x12[..., H:]
    hidden = jax.nn.silu(x1) * x2
    return jnp.einsum("bnh,ho->bno", hidden, w3) + b3


def swiglu_ffn_ref_bf16(x, w12, b12, w3, b3):
    """Reference matching the kernel's bf16-operand / f32-accumulate path."""
    f32 = jnp.float32
    xb = x.astype(jnp.bfloat16).astype(f32)
    w12b = w12.astype(jnp.bfloat16).astype(f32)
    w3b = w3.astype(jnp.bfloat16).astype(f32)
    H = w12.shape[1] // 2
    x12 = jnp.einsum("bnd,dh->bnh", xb, w12b) + b12
    x1, x2 = x12[..., :H], x12[..., H:]
    hidden = jax.nn.silu(x1) * x2
    hidden = hidden.astype(jnp.bfloat16).astype(f32)
    return jnp.einsum("bnh,ho->bno", hidden, w3b) + b3


if __name__ == "__main__":
    # Small shapes consistent with the module: batch=2, seq=8, in_features=32,
    # hidden_features=32, out_features=32 (defaults to in_features).
    B, N, D = 2, 8, 32
    H = 32
    Dout = 32

    key = jax.random.PRNGKey(0)
    kx, kw12, kb12, kw3, kb3 = jax.random.split(key, 5)

    x = jax.random.normal(kx, (B, N, D), dtype=jnp.float32)
    # Deterministic "Linear"-like init (scaled normal); stored pre-transposed.
    w12 = jax.random.normal(kw12, (D, 2 * H), dtype=jnp.float32) * (1.0 / (D ** 0.5))
    b12 = jax.random.normal(kb12, (2 * H,), dtype=jnp.float32) * 0.01
    w3 = jax.random.normal(kw3, (H, Dout), dtype=jnp.float32) * (1.0 / (H ** 0.5))
    b3 = jax.random.normal(kb3, (Dout,), dtype=jnp.float32) * 0.01

    # Prepare (pad / cast / repack) the weights once, as at model init.
    params = prepare_swiglu_params(w12, b12, w3, b3)
    out = swiglu_ffn_prepared(x, params)
    out = jax.block_until_ready(out)
    assert out.shape == (B, N, Dout)

    # Tight check against a reference that mirrors the kernel's bf16 MXU path.
    ref_bf16 = swiglu_ffn_ref_bf16(x, w12, b12, w3, b3)
    assert jnp.allclose(out, ref_bf16, atol=1e-2, rtol=1e-2), \
        "mismatch vs bf16-matched reference"

    # Loose sanity check against the full-precision PyTorch-equivalent math.
    ref_f32 = swiglu_ffn_ref(x, w12, b12, w3, b3)
    assert jnp.allclose(out, ref_f32, atol=1e-1, rtol=1e-1), \
        "mismatch vs f32 reference"

    print("KERNEL_OK")
</pallas_src>

<mosaic_0001>
module attributes {stable_mosaic.version = 11 : i64} {
  func.func @_swiglu_kernel(%arg0: i32, %arg1: i32, %arg2: memref<16x128xbf16, #tpu.memory_space<vmem>>, %arg3: memref<128x256xbf16, #tpu.memory_space<vmem>>, %arg4: memref<1x256xf32, #tpu.memory_space<vmem>>, %arg5: memref<128x128xbf16, #tpu.memory_space<vmem>>, %arg6: memref<1x128xf32, #tpu.memory_space<vmem>>, %arg7: memref<16x128xf32, #tpu.memory_space<vmem>>, %arg8: memref<16x128xf32, #tpu.memory_space<vmem>>) attributes {dimension_semantics = [#tpu.dimension_semantics<parallel>, #tpu.dimension_semantics<arbitrary>], iteration_bounds = array<i64: 1, 1>, scalar_prefetch = 0 : i64, scratch_operands = 1 : i64, tpu.core_type = #tpu.core_type<tc>, window_params = [{transform_indices = @transform_0, window_bounds = array<i64: 16, 128>}, {transform_indices = @transform_1, window_bounds = array<i64: 128, 256>}, {transform_indices = @transform_2, window_bounds = array<i64: 1, 256>}, {transform_indices = @transform_3, window_bounds = array<i64: 128, 128>}, {pipeline_mode = #tpu.pipeline_mode<synchronous>, transform_indices = @transform_4, window_bounds = array<i64: 1, 128>}, {transform_indices = @transform_5, window_bounds = array<i64: 16, 128>}]} {
    %c0 = arith.constant 0 : index
    %c0_0 = arith.constant 0 : index
    %0 = vector.load %arg2[%c0, %c0_0] : memref<16x128xbf16, #tpu.memory_space<vmem>>, vector<16x128xbf16>
    %c0_1 = arith.constant 0 : index
    %c0_2 = arith.constant 0 : index
    %1 = vector.load %arg3[%c0_1, %c0_2] : memref<128x256xbf16, #tpu.memory_space<vmem>>, vector<128x256xbf16>
    %cst = arith.constant dense<0.000000e+00> : vector<16x256xf32>
    %2 = tpu.matmul %0, %1, %cst {dimension_numbers = #tpu.dot_dimension_numbers<[1], [0], [0], [1], [0, 0, 1, 1], [], []>} : vector<16x128xbf16>, vector<128x256xbf16>, vector<16x256xf32> -> vector<16x256xf32>
    %c0_3 = arith.constant 0 : index
    %c0_4 = arith.constant 0 : index
    %3 = vector.load %arg4[%c0_3, %c0_4] : memref<1x256xf32, #tpu.memory_space<vmem>>, vector<1x256xf32>
    %4 = vector.broadcast %3 : vector<1x256xf32> to vector<16x256xf32>
    %5 = arith.addf %2, %4 : vector<16x256xf32>
    %6 = vector.extract_strided_slice %5 {offsets = [0, 0], sizes = [16, 128], strides = [1, 1]} : vector<16x256xf32> to vector<16x128xf32>
    %7 = vector.extract_strided_slice %5 {offsets = [0, 128], sizes = [16, 128], strides = [1, 1]} : vector<16x256xf32> to vector<16x128xf32>
    %8 = arith.negf %6 : vector<16x128xf32>
    %9 = math.exp %8 : vector<16x128xf32>
    %cst_5 = arith.constant 1.000000e+00 : f32
    %10 = vector.broadcast %cst_5 : f32 to vector<16x128xf32>
    %11 = arith.addf %10, %9 : vector<16x128xf32>
    %12 = arith.divf %10, %11 : vector<16x128xf32>
    %13 = arith.mulf %6, %12 : vector<16x128xf32>
    %14 = arith.mulf %13, %7 : vector<16x128xf32>
    %15 = arith.truncf %14 : vector<16x128xf32> to vector<16x128xbf16>
    %c0_6 = arith.constant 0 : index
    %c0_7 = arith.constant 0 : index
    %16 = vector.load %arg5[%c0_6, %c0_7] : memref<128x128xbf16, #tpu.memory_space<vmem>>, vector<128x128xbf16>
    %cst_8 = arith.constant dense<0.000000e+00> : vector<16x128xf32>
    %17 = tpu.matmul %15, %16, %cst_8 {dimension_numbers = #tpu.dot_dimension_numbers<[1], [0], [0], [1], [0, 0, 1, 1], [], []>} : vector<16x128xbf16>, vector<128x128xbf16>, vector<16x128xf32> -> vector<16x128xf32>
    %c0_i32 = arith.constant 0 : i32
    %18 = arith.cmpi eq, %arg1, %c0_i32 : i32
    %19 = arith.extui %18 : i1 to i32
    %c0_i32_9 = arith.constant 0 : i32
    %20 = arith.cmpi ne, %19, %c0_i32_9 : i32
    scf.if %20 {
      %c0_14 = arith.constant 0 : index
      %c0_15 = arith.constant 0 : index
      %27 = vector.load %arg8[%c0_14, %c0_15] : memref<16x128xf32, #tpu.memory_space<vmem>>, vector<16x128xf32>
      tpu.vector_store %arg8[%c0_14, %c0_15], %17 {strides = array<i32>} : memref<16x128xf32, #tpu.memory_space<vmem>>, vector<16x128xf32>,
    } else {
    }
    %c0_i32_10 = arith.constant 0 : i32
    %21 = arith.cmpi ne, %arg1, %c0_i32_10 : i32
    %22 = arith.extui %21 : i1 to i32
    %c0_i32_11 = arith.constant 0 : i32
    %23 = arith.cmpi ne, %22, %c0_i32_11 : i32
    scf.if %23 {
      %c0_14 = arith.constant 0 : index
      %c0_15 = arith.constant 0 : index
      %27 = vector.load %arg8[%c0_14, %c0_15] : memref<16x128xf32, #tpu.memory_space<vmem>>, vector<16x128xf32>
      %28 = arith.addf %27, %17 : vector<16x128xf32>
      %c0_16 = arith.constant 0 : index
      %c0_17 = arith.constant 0 : index
      %29 = vector.load %arg8[%c0_16, %c0_17] : memref<16x128xf32, #tpu.memory_space<vmem>>, vector<16x128xf32>
      tpu.vector_store %arg8[%c0_16, %c0_17], %28 {strides = array<i32>} : memref<16x128xf32, #tpu.memory_space<vmem>>, vector<16x128xf32>,
    } else {
    }
    %c0_i32_12 = arith.constant 0 : i32
    %24 = arith.cmpi eq, %arg1, %c0_i32_12 : i32
    %25 = arith.extui %24 : i1 to i32
    %c0_i32_13 = arith.constant 0 : i32
    %26 = arith.cmpi ne, %25, %c0_i32_13 : i32
    scf.if %26 {
      %c0_14 = arith.constant 0 : index
      %c0_15 = arith.constant 0 : index
      %27 = vector.load %arg8[%c0_14, %c0_15] : memref<16x128xf32, #tpu.memory_space<vmem>>, vector<16x128xf32>
      %c0_16 = arith.constant 0 : index
      %c0_17 = arith.constant 0 : index
      %28 = vector.load %arg6[%c0_16, %c0_17] : memref<1x128xf32, #tpu.memory_space<vmem>>, vector<1x128xf32>
      %29 = vector.broadcast %28 : vector<1x128xf32> to vector<16x128xf32>
      %30 = arith.addf %27, %29 : vector<16x128xf32>
      %c0_18 = arith.constant 0 : index
      %c0_19 = arith.constant 0 : index
      %31 = vector.load %arg7[%c0_18, %c0_19] : memref<16x128xf32, #tpu.memory_space<vmem>>, vector<16x128xf32>
      tpu.vector_store %arg7[%c0_18, %c0_19], %30 {strides = array<i32>} : memref<16x128xf32, #tpu.memory_space<vmem>>, vector<16x128xf32>,
    } else {
    }
    return
  }
  func.func @transform_0(%arg0: i32, %arg1: i32) -> (i32, i32) {
    %c0_i32 = arith.constant 0 : i32
    %c0_i32_0 = arith.constant 0 : i32
    return %arg0, %c0_i32 : i32, i32
  }
  func.func @transform_1(%arg0: i32, %arg1: i32) -> (i32, i32) {
    %c0_i32 = arith.constant 0 : i32
    %c0_i32_0 = arith.constant 0 : i32
    return %c0_i32, %arg1 : i32, i32
  }
  func.func @transform_2(%arg0: i32, %arg1: i32) -> (i32, i32) {
    %c0_i32 = arith.constant 0 : i32
    %c0_i32_0 = arith.constant 0 : i32
    return %c0_i32, %arg1 : i32, i32
  }
  func.func @transform_3(%arg0: i32, %arg1: i32) -> (i32, i32) {
    %c0_i32 = arith.constant 0 : i32
    %c0_i32_0 = arith.constant 0 : i32
    return %arg1, %c0_i32 : i32, i32
  }
  func.func @transform_4(%arg0: i32, %arg1: i32) -> (i32, i32) {
    %c0_i32 = arith.constant 0 : i32
    %c0_i32_0 = arith.constant 0 : i32
    %c0_i32_1 = arith.constant 0 : i32
    return %c0_i32, %c0_i32_0 : i32, i32
  }
  func.func @transform_5(%arg0: i32, %arg1: i32) -> (i32, i32) {
    %c0_i32 = arith.constant 0 : i32
    %c0_i32_0 = arith.constant 0 : i32
    return %arg0, %c0_i32 : i32, i32
  }
}

</mosaic_0001>

<llo_original>
// kernel: tpu_custom_call.1
$region0: #{tpu_custom_call.1}
  #allocation0 [shape = 'u32[]', space=smem, size = 0x4, offset = 0x4, fixed_abs, tag = 'smem constant byte address 0x4 - core index']
  #allocation1 [shape = 'u32[72,128]{1,0:T(1,128)}', space=vmem, size = 0x9000, scoped, tag = 'internal scratch']
  #allocation2 [shape = 'f32[16,128]{1,0:T(8,128)}', space=vmem, size = 0x2000, scoped, tag = 'scratch operand']
  %s0 = inlined_call_operand.hbm [shape: bf16[16,128], index: 0, kind: input, shape index: {}]
  %s1 = inlined_call_operand.hbm [shape: bf16[128,256], index: 1, kind: input, shape index: {}]
  %s2 = inlined_call_operand.hbm [shape: f32[1,256], index: 2, kind: input, shape index: {}]
  %s3 = inlined_call_operand.hbm [shape: bf16[128,128], index: 3, kind: input, shape index: {}]
  %s4 = inlined_call_operand.vmem [shape: f32[1,128], index: 4, kind: input, shape index: {}]
  %s5 = inlined_call_operand.hbm [shape: f32[16,128], index: 5, kind: output, shape index: {}]
  %s6 = sld [smem:[#allocation0]]
  $region58: #{tpu_custom_call.1} parent=0
    _
  %s8 = ssub.s32 1, %s6
  %s9 = scalar_select 0, %s8, %s6
  $region1: #{tpu_custom_call.1} parent=0
    #allocation3 [shape = 'u8[4096]{0}', space=vmem, size = 0x1000, scoped, tag = 'input window, operand 0, single buffered']
    #allocation4 [shape = 's32[1]{0}', space=sflag, size = 0x4, scoped, tag = 'scoped memory for tpu_custom_call.1']
    #allocation5 [shape = 's32[1]{0}', space=sflag, size = 0x4, scoped, tag = 'scoped memory for tpu_custom_call.1']
    #allocation6 [shape = 'u8[65536]{0}', space=vmem, size = 0x10000, scoped, tag = 'input window, operand 1, single buffered']
    #allocation7 [shape = 's32[1]{0}', space=sflag, size = 0x4, scoped, tag = 'scoped memory for tpu_custom_call.1']
    #allocation8 [shape = 'u8[1024]{0}', space=vmem, size = 0x400, scoped, tag = 'input window, operand 2, single buffered']
    #allocation9 [shape = 'u8[32768]{0}', space=vmem, size = 0x8000, scoped, tag = 'input window, operand 3, single buffered']
    #allocation10 [shape = 's32[1]{0}', space=sflag, size = 0x4, scoped, tag = 'scoped memory for tpu_custom_call.1']
    #allocation11 [shape = 'u8[8192]{0}', space=vmem, size = 0x2000, scoped, tag = 'output window, operand 0, single buffered']
    %10 = vsyncpa [#allocation4], 0
    %11 = vsyncpa [#allocation7], 0
    %12 = vsyncpa [#allocation10], 0
    %13 = vsyncpa [#allocation5], 0
    // Predicated region
    $region2: #{tpu_custom_call.1} parent=1 // pred_check
      _
    $region3: #{tpu_custom_call.1} parent=1 // pred_check_branch
      %15 = sbr.rel (0) target = $region5
    $region4: #{tpu_custom_call.1} parent=1 // pred_region
      %17 = vsyncadd [#allocation4], 0
      %s18 = sshll.u32 %s0, 4
      %s19 = int_to_ptr.hbm [resolvable:$true] %s18
      %s20 = sshll.u32 [#allocation3], 4
      %s21 = int_to_ptr.vmem [resolvable:$true] %s20
      %26 = dma.hbm_to_vmem [thread:$0]  %s19, 128, %s21, [#allocation4], 64, 64, 4
    $region5: #{tpu_custom_call.1} parent=1 // pred_fallthru
      _
    // Predicated region
    $region6: #{tpu_custom_call.1} parent=1 // pred_check
      _
    $region7: #{tpu_custom_call.1} parent=1 // pred_check_branch
      %28 = sbr.rel (0) target = $region9
    $region8: #{tpu_custom_call.1} parent=1 // pred_region
      %30 = vsyncadd [#allocation7], 0
      %s31 = sshll.u32 %s1, 4
      %s32 = int_to_ptr.hbm [resolvable:$true] %s31
      %s33 = sshll.u32 [#allocation6], 4
      %s34 = int_to_ptr.vmem [resolvable:$true] %s33
      %39 = dma.hbm_to_vmem [thread:$0]  %s32, 2048, %s34, [#allocation7], 128, 128, 8
    $region9: #{tpu_custom_call.1} parent=1 // pred_fallthru
      _
    // Predicated region
    $region10: #{tpu_custom_call.1} parent=1 // pred_check
      _
    $region11: #{tpu_custom_call.1} parent=1 // pred_check_branch
      %41 = sbr.rel (0) target = $region13
    $region12: #{tpu_custom_call.1} parent=1 // pred_region
      %43 = vsyncadd [#allocation7], 0
      %s45 = sshll.u32 %s2, 4
      %s46 = int_to_ptr.hbm [resolvable:$true] %s45
      %s47 = sshll.u32 [#allocation8], 4
      %s48 = int_to_ptr.vmem [resolvable:$true] %s47
      %50 = dma.hbm_to_vmem [thread:$0]  %s46, 32, %s48, [#allocation7]
    $region13: #{tpu_custom_call.1} parent=1 // pred_fallthru
      _
    // Predicated region
    $region14: #{tpu_custom_call.1} parent=1 // pred_check
      _
    $region15: #{tpu_custom_call.1} parent=1 // pred_check_branch
      %52 = sbr.rel (0) target = $region17
    $region16: #{tpu_custom_call.1} parent=1 // pred_region
      %54 = vsyncadd [#allocation10], 0
      %s55 = sshll.u32 %s3, 4
      %s56 = int_to_ptr.hbm [resolvable:$true] %s55
      %s57 = sshll.u32 [#allocation9], 4
      %s58 = int_to_ptr.vmem [resolvable:$true] %s57
      %63 = dma.hbm_to_vmem [thread:$0]  %s56, 1024, %s58, [#allocation10], 64, 64, 4
    $region17: #{tpu_custom_call.1} parent=1 // pred_fallthru
      _
    // Predicated region
    $region18: #{tpu_custom_call.1} parent=1 // pred_check
      _
    $region19: #{tpu_custom_call.1} parent=1 // pred_check_branch
      %65 = sbr.rel (0) target = $region21
    $region20: #{tpu_custom_call.1} parent=1 // pred_region
      _
    $region21: #{tpu_custom_call.1} parent=1 // pred_fallthru
      _
    // Predicated region
    $region22: #{tpu_custom_call.1} parent=1 // pred_check
      _
    $region23: #{tpu_custom_call.1} parent=1 // pred_check_branch
      %67 = sbr.rel (0) target = $region25
    $region24: #{tpu_custom_call.1} parent=1 // pred_region
      %69 = dma.done [#allocation4], 128
    $region25: #{tpu_custom_call.1} parent=1 // pred_fallthru
      _
    // Predicated region
    $region26: #{tpu_custom_call.1} parent=1 // pred_check
      _
    $region27: #{tpu_custom_call.1} parent=1 // pred_check_branch
      %71 = sbr.rel (0) target = $region29
    $region28: #{tpu_custom_call.1} parent=1 // pred_region
      %73 = dma.done [#allocation7], 2048
    $region29: #{tpu_custom_call.1} parent=1 // pred_fallthru
      _
    // Predicated region
    $region30: #{tpu_custom_call.1} parent=1 // pred_check
      _
    $region31: #{tpu_custom_call.1} parent=1 // pred_check_branch
      %75 = sbr.rel (0) target = $region33
    $region32: #{tpu_custom_call.1} parent=1 // pred_region
      %77 = dma.done [#allocation7], 32
    $region33: #{tpu_custom_call.1} parent=1 // pred_fallthru
      _
    // Predicated region
    $region34: #{tpu_custom_call.1} parent=1 // pred_check
      _
    $region35: #{tpu_custom_call.1} parent=1 // pred_check_branch
      %79 = sbr.rel (0) target = $region37
    $region36: #{tpu_custom_call.1} parent=1 // pred_region
      %81 = dma.done [#allocation10], 1024
    $region37: #{tpu_custom_call.1} parent=1 // pred_fallthru
      _
    %v82 = vld [vmem:[#allocation3] sm:$0xf]
    %v83 = vld [vmem:[#allocation3 + $0x4] sm:$0xf]
    %v84 = vld [vmem:[#allocation6] sm:$0xff]
    %v85 = vld [vmem:[#allocation6 + $0x8] sm:$0xff]
    %v86 = vld [vmem:[#allocation6 + $0x10] sm:$0xff]
    %v87 = vld [vmem:[#allocation6 + $0x18] sm:$0xff]
    %v88 = vld [vmem:[#allocation6 + $0x20] sm:$0xff]
    %v89 = vld [vmem:[#allocation6 + $0x28] sm:$0xff]
    %v90 = vld [vmem:[#allocation6 + $0x30] sm:$0xff]
    %v91 = vld [vmem:[#allocation6 + $0x38] sm:$0xff]
    %v92 = vld [vmem:[#allocation6 + $0x40] sm:$0xff]
    %v93 = vld [vmem:[#allocation6 + $0x48] sm:$0xff]
    %v94 = vld [vmem:[#allocation6 + $0x50] sm:$0xff]
    %v95 = vld [vmem:[#allocation6 + $0x58] sm:$0xff]
    %v96 = vld [vmem:[#allocation6 + $0x60] sm:$0xff]
    %v97 = vld [vmem:[#allocation6 + $0x68] sm:$0xff]
    %v98 = vld [vmem:[#allocation6 + $0x70] sm:$0xff]
    %v99 = vld [vmem:[#allocation6 + $0x78] sm:$0xff]
    %v100 = vld [vmem:[#allocation8] sm:$0x3]
    %v102 = vperm.slane %v100, 0
    %v103 = vperm.slane %v100, 1
    %v108 = vunpack.c.l.b16 %v82
    %v109 = vunpack.c.l.b16 %v83
    %v110 = vpack.c.b16 %v109, %v108
    %v128 = vunpack.c.l.b16 %v84
    %v129 = vunpack.c.h.b16 %v84
    %v130 = vunpack.c.l.b16 %v85
    %v131 = vunpack.c.h.b16 %v85
    %v132 = vunpack.c.l.b16 %v86
    %v133 = vunpack.c.h.b16 %v86
    %v134 = vunpack.c.l.b16 %v87
    %v135 = vunpack.c.h.b16 %v87
    %v136 = vunpack.c.l.b16 %v88
    %v137 = vunpack.c.h.b16 %v88
    %v138 = vunpack.c.l.b16 %v89
    %v139 = vunpack.c.h.b16 %v89
    %v140 = vunpack.c.l.b16 %v90
    %v141 = vunpack.c.h.b16 %v90
    %v142 = vunpack.c.l.b16 %v91
    %v143 = vunpack.c.h.b16 %v91
    %v144 = vunpack.c.l.b16 %v92
    %v145 = vunpack.c.h.b16 %v92
    %v146 = vunpack.c.l.b16 %v93
    %v147 = vunpack.c.h.b16 %v93
    %v148 = vunpack.c.l.b16 %v94
    %v149 = vunpack.c.h.b16 %v94
    %v150 = vunpack.c.l.b16 %v95
    %v151 = vunpack.c.h.b16 %v95
    %v152 = vunpack.c.l.b16 %v96
    %v153 = vunpack.c.h.b16 %v96
    %v154 = vunpack.c.l.b16 %v97
    %v155 = vunpack.c.h.b16 %v97
    %v156 = vunpack.c.l.b16 %v98
    %v157 = vunpack.c.h.b16 %v98
    %v158 = vunpack.c.l.b16 %v99
    %v159 = vunpack.c.h.b16 %v99
    %v160 = vpack.c.b16 %v130, %v128
    %v161 = vpack.c.b16 %v131, %v129
    %v162 = vpack.c.b16 %v134, %v132
    %v163 = vpack.c.b16 %v135, %v133
    %v164 = vpack.c.b16 %v138, %v136
    %v165 = vpack.c.b16 %v139, %v137
    %v166 = vpack.c.b16 %v142, %v140
    %v167 = vpack.c.b16 %v143, %v141
    %v168 = vpack.c.b16 %v146, %v144
    %v169 = vpack.c.b16 %v147, %v145
    %v170 = vpack.c.b16 %v150, %v148
    %v171 = vpack.c.b16 %v151, %v149
    %v172 = vpack.c.b16 %v154, %v152
    %v173 = vpack.c.b16 %v155, %v153
    %v174 = vpack.c.b16 %v158, %v156
    %v175 = vpack.c.b16 %v159, %v157
    %192 = vmatpush.bf16.msra.mxu0 %v174
    %193 = vmatpush.bf16.msra.mxu0 %v172
    %194 = vmatpush.bf16.msra.mxu0 %v170
    %195 = vmatpush.bf16.msra.mxu0 %v168
    %196 = vmatpush.bf16.msra.mxu0 %v166
    %197 = vmatpush.bf16.msra.mxu0 %v164
    %198 = vmatpush.bf16.msra.mxu0 %v162
    %199 = vmatpush.bf16.msra.mxu0 %v160
    %200 = vmatmul.bf16.gmra.mxu0 %v110
    %v201 = vpop.f32.mrf.mxu0
    %v202 = vadd.f32 %v102, %v201
    %v203 = vpop.f32.mrf.mxu0
    %v204 = vadd.f32 %v102, %v203
    %205 = vdwg.mxu0
    %206 = vmatpush.bf16.msra.mxu0 %v175
    %207 = vmatpush.bf16.msra.mxu0 %v173
    %208 = vmatpush.bf16.msra.mxu0 %v171
    %209 = vmatpush.bf16.msra.mxu0 %v169
    %210 = vmatpush.bf16.msra.mxu0 %v167
    %211 = vmatpush.bf16.msra.mxu0 %v165
    %212 = vmatpush.bf16.msra.mxu0 %v163
    %213 = vmatpush.bf16.msra.mxu0 %v161
    %214 = vmatmul.bf16.gmra.mxu0 %v110
    %v215 = vpop.f32.mrf.mxu0
    %v216 = vadd.f32 %v103, %v215
    %v217 = vpop.f32.mrf.mxu0
    %v218 = vadd.f32 %v103, %v217
    %219 = vdwg.mxu0
    %v220 = vxor.u32 %v202, 2147483648
    %v221 = vxor.u32 %v204, 2147483648
    %v222 = vmul.f32 %v220, 1.442695
    %v223 = vpow.pop %v222
    %v224 = vmul.f32 %v221, 1.442695
    %v225 = vpow.pop %v224
    %v226 = vadd.f32 %v223, 1.0
    %v227 = vadd.f32 %v225, 1.0
    %v228 = vrcp.pop %v226
    %v229 = vmul.f32 %v226, %v228
    %v230 = vsub.f32 1.0, %v229
    %v231 = vmul.f32 %v228, %v230
    %v232 = vadd.f32 %v228, %v231
    %vm233 = vweird.f32 %v226
    %vm234 = vweird.f32 %v228
    %vm235 = vmor %vm233, %vm234
    %v236 = vsel %vm235, %v228, %v232
    %v237 = vand.u32 2147483647, %v226
    %vm238 = vcmp.eq.f32.partialorder %v237, 8.507059e+37
    %v239 = vand.u32 %v226, 2147483648
    %v240 = vor.u32 1.1754944e-38, %v239
    %v241 = vsel %vm238, %v240, %v236
    %v242 = vmul.f32 1.0, %v241
    %v243 = vrcp.pop %v227
    %v244 = vmul.f32 %v227, %v243
    %v245 = vsub.f32 1.0, %v244
    %v246 = vmul.f32 %v243, %v245
    %v247 = vadd.f32 %v243, %v246
    %vm248 = vweird.f32 %v227
    %vm249 = vweird.f32 %v243
    %vm250 = vmor %vm248, %vm249
    %v251 = vsel %vm250, %v243, %v247
    %v252 = vand.u32 2147483647, %v227
    %vm253 = vcmp.eq.f32.partialorder %v252, 8.507059e+37
    %v254 = vand.u32 %v227, 2147483648
    %v255 = vor.u32 1.1754944e-38, %v254
    %v256 = vsel %vm253, %v255, %v251
    %v257 = vmul.f32 1.0, %v256
    %v258 = vmul.f32 %v202, %v242
    %v259 = vmul.f32 %v204, %v257
    %v260 = vmul.f32 %v258, %v216
    %v261 = vmul.f32 %v259, %v218
    %v262 = vpack.c.bf16 %v261, %v260
    %v263 = vld [vmem:[#allocation9] sm:$0xf]
    %v264 = vld [vmem:[#allocation9 + $0x4] sm:$0xf]
    %v265 = vld [vmem:[#allocation9 + $0x8] sm:$0xf]
    %v266 = vld [vmem:[#allocation9 + $0xc] sm:$0xf]
    %v267 = vld [vmem:[#allocation9 + $0x10] sm:$0xf]
    %v268 = vld [vmem:[#allocation9 + $0x14] sm:$0xf]
    %v269 = vld [vmem:[#allocation9 + $0x18] sm:$0xf]
    %v270 = vld [vmem:[#allocation9 + $0x1c] sm:$0xf]
    %v271 = vld [vmem:[#allocation9 + $0x20] sm:$0xf]
    %v272 = vld [vmem:[#allocation9 + $0x24] sm:$0xf]
    %v273 = vld [vmem:[#allocation9 + $0x28] sm:$0xf]
    %v274 = vld [vmem:[#allocation9 + $0x2c] sm:$0xf]
    %v275 = vld [vmem:[#allocation9 + $0x30] sm:$0xf]
    %v276 = vld [vmem:[#allocation9 + $0x34] sm:$0xf]
    %v277 = vld [vmem:[#allocation9 + $0x38] sm:$0xf]
    %v278 = vld [vmem:[#allocation9 + $0x3c] sm:$0xf]
    %v295 = vunpack.c.l.b16 %v263
    %v296 = vunpack.c.l.b16 %v264
    %v297 = vunpack.c.l.b16 %v265
    %v298 = vunpack.c.l.b16 %v266
    %v299 = vunpack.c.l.b16 %v267
    %v300 = vunpack.c.l.b16 %v268
    %v301 = vunpack.c.l.b16 %v269
    %v302 = vunpack.c.l.b16 %v270
    %v303 = vunpack.c.l.b16 %v271
    %v304 = vunpack.c.l.b16 %v272
    %v305 = vunpack.c.l.b16 %v273
    %v306 = vunpack.c.l.b16 %v274
    %v307 = vunpack.c.l.b16 %v275
    %v308 = vunpack.c.l.b16 %v276
    %v309 = vunpack.c.l.b16 %v277
    %v310 = vunpack.c.l.b16 %v278
    %v311 = vpack.c.b16 %v296, %v295
    %v312 = vpack.c.b16 %v298, %v297
    %v313 = vpack.c.b16 %v300, %v299
    %v314 = vpack.c.b16 %v302, %v301
    %v315 = vpack.c.b16 %v304, %v303
    %v316 = vpack.c.b16 %v306, %v305
    %v317 = vpack.c.b16 %v308, %v307
    %v318 = vpack.c.b16 %v310, %v309
    %327 = vmatpush.bf16.msra.mxu0 %v318
    %328 = vmatpush.bf16.msra.mxu0 %v317
    %329 = vmatpush.bf16.msra.mxu0 %v316
    %330 = vmatpush.bf16.msra.mxu0 %v315
    %331 = vmatpush.bf16.msra.mxu0 %v314
    %332 = vmatpush.bf16.msra.mxu0 %v313
    %333 = vmatpush.bf16.msra.mxu0 %v312
    %334 = vmatpush.bf16.msra.mxu0 %v311
    %335 = vmatmul.bf16.gmra.mxu0 %v262
    %v336 = vpop.f32.mrf.mxu0
    %v337 = vadd.f32 0.0, %v336
    %v338 = vpop.f32.mrf.mxu0
    %v339 = vadd.f32 0.0, %v338
    %340 = vdwg.mxu0
    %p341 = scmp.eq.s32.totalorder 0, 0
    // Predicated region
    $region38: #{tpu_custom_call.1} parent=1 // pred_check
      %p342 = pneg %p341
    $region39: #{tpu_custom_call.1} parent=1 // pred_check_branch
      %344 = sbr.rel (%p342) target = $region41
    $region40: #{tpu_custom_call.1} parent=1 // pred_region
      %345 = vst [vmem:[#allocation2] sm:$0xff] %v337
      %346 = vst [vmem:[#allocation2 + $0x8] sm:$0xff] %v339
    $region41: #{tpu_custom_call.1} parent=1 // pred_fallthru
      _
    %p347 = scmp.ne.s32.totalorder 0, 0
    // Predicated region
    $region42: #{tpu_custom_call.1} parent=1 // pred_check
      %p348 = pneg %p347
    $region43: #{tpu_custom_call.1} parent=1 // pred_check_branch
      %350 = sbr.rel (%p348) target = $region45
    $region44: #{tpu_custom_call.1} parent=1 // pred_region
      %v351 = vld [vmem:[#allocation2] sm:$0xff]
      %v352 = vld [vmem:[#allocation2 + $0x8] sm:$0xff]
      %v353 = vadd.f32 %v351, %v337
      %v354 = vadd.f32 %v352, %v339
      %355 = vst [vmem:[#allocation2] sm:$0xff] %v353
      %356 = vst [vmem:[#allocation2 + $0x8] sm:$0xff] %v354
    $region45: #{tpu_custom_call.1} parent=1 // pred_fallthru
      _
    // Predicated region
    $region46: #{tpu_custom_call.1} parent=1 // pred_check
      %p357 = pneg %p341
    $region47: #{tpu_custom_call.1} parent=1 // pred_check_branch
      %359 = sbr.rel (%p357) target = $region49
    $region48: #{tpu_custom_call.1} parent=1 // pred_region
      %v360 = vld [vmem:[#allocation2] sm:$0xff]
      %v361 = vld [vmem:[#allocation2 + $0x8] sm:$0xff]
      %v362 = vld [vmem:[%s4] sm:$0x1]
      %v364 = vperm.slane %v362, 0
      %v366 = vadd.f32 %v360, %v364
      %v367 = vadd.f32 %v361, %v364
      %368 = vst [vmem:[#allocation11] sm:$0xff] %v366
      %369 = vst [vmem:[#allocation11 + $0x8] sm:$0xff] %v367
    $region49: #{tpu_custom_call.1} parent=1 // pred_fallthru
      _
    // Predicated region
    $region50: #{tpu_custom_call.1} parent=1 // pred_check
      _
    $region51: #{tpu_custom_call.1} parent=1 // pred_check_branch
      %371 = sbr.rel (0) target = $region53
    $region52: #{tpu_custom_call.1} parent=1 // pred_region
      %373 = vsyncadd [#allocation5], 0
      %s374 = sshll.u32 [#allocation11], 4
      %s375 = int_to_ptr.vmem [resolvable:$true] %s374
      %s376 = sshll.u32 %s5, 4
      %s377 = int_to_ptr.hbm [resolvable:$true] %s376
      %382 = dma.vmem_to_hbm [thread:$0]  %s375, 256, %s377, [#allocation5], 128, 128, 8
    $region53: #{tpu_custom_call.1} parent=1 // pred_fallthru
      _
    // Predicated region
    $region54: #{tpu_custom_call.1} parent=1 // pred_check
      _
    $region55: #{tpu_custom_call.1} parent=1 // pred_check_branch
      %384 = sbr.rel (0) target = $region57
    $region56: #{tpu_custom_call.1} parent=1 // pred_region
      %386 = dma.done [#allocation5], 256
    $region57: #{tpu_custom_call.1} parent=1 // pred_fallthru
      _
    %387 = vsyncpa [#allocation4], 1
    %388 = vsyncpa [#allocation7], 1
    %389 = vsyncpa [#allocation10], 1
    %390 = vsyncpa [#allocation5], 1

</llo_original>
